<compile_context>
chip_gen: v5e
topology: v5e:2x2
jax: 0.10.0
libtpu: 0.0.40
codegen_flags: <defaults>
</compile_context>

<pallas_src>
import functools

import jax
import jax.numpy as jnp
from jax import lax
from jax.experimental import pallas as pl
from jax.experimental.pallas import tpu as pltpu


def _im2col_taps(xp, ml, mr, *, P, W, HW):
    """Build the (9*K, HW) im2col matrix from a lane-padded flat activation.

    xp: (K, HW + 2P) zero-padded flat activation (f32, in registers/VMEM view)
    ml/mr: (1, HW) column-validity masks for dx = -1 / dx = +1 taps.
    """
    pieces = []
    for dy in (-1, 0, 1):
        for dx in (-1, 0, 1):
            start = P + dy * W + dx               # static lane offset
            sl = xp[:, start:start + HW]          # (K, HW)
            if dx == -1:
                sl = sl * ml                      # zero the j==0 column
            elif dx == 1:
                sl = sl * mr                      # zero the j==W-1 column
            pieces.append(sl)
    return jnp.concatenate(pieces, axis=0)        # (9*K, HW)


def ring_enhancer_kernel(x_ref, w1_ref, w2_ref, mask_ref, out_ref, *, W, P):
    # x_ref:    (1, Cin, HW + 2P) f32   [feat ; radial] flattened + lane-padded
    # w1_ref:   (hidden, 9*Cin)   bf16
    # w2_ref:   (C, 9*hidden)     bf16
    # mask_ref: (2, HW)           f32   row0: dx=-1 valid, row1: dx=+1 valid
    # out_ref:  (1, C, HW)        f32
    C = out_ref.shape[1]
    HW = out_ref.shape[2]
    hidden = w1_ref.shape[0]

    xv = x_ref[0]                                 # (Cin, HW + 2P) f32
    ml = mask_ref[0:1, :]                         # (1, HW)
    mr = mask_ref[1:2, :]

    # ---- conv1 (3x3, pad=1, no bias) as one MXU matmul, then ReLU ----
    cols1 = _im2col_taps(xv, ml, mr, P=P, W=W, HW=HW).astype(jnp.bfloat16)
    acc1 = jnp.dot(w1_ref[...], cols1, preferred_element_type=jnp.float32)
    h = jnp.maximum(acc1, 0.0)                    # (hidden, HW) f32

    # zero-pad hidden activation along the flat spatial axis — in registers
    zpad = jnp.zeros((hidden, P), jnp.float32)
    hp = jnp.concatenate([zpad, h, zpad], axis=1)  # (hidden, HW + 2P)

    # ---- conv2 (3x3, pad=1, no bias) as one MXU matmul, then sigmoid ----
    cols2 = _im2col_taps(hp, ml, mr, P=P, W=W, HW=HW).astype(jnp.bfloat16)
    acc2 = jnp.dot(w2_ref[...], cols2, preferred_element_type=jnp.float32)
    gate = jax.nn.sigmoid(acc2)                   # (C, HW) f32

    # ---- ring gating: feat is the first C channels of x (kept f32) ----
    feat = xv[:C, P:P + HW]                       # (C, HW) f32
    out_ref[0] = (feat * gate).astype(out_ref.dtype)


@jax.jit
def ring_enhancer(feat_nchw, radial_nchw, w1_oihw, w2_oihw):
    """feat: (N,C,H,W), radial: (N,1,H,W), conv weights in PyTorch OIHW."""
    N, C, H, W = feat_nchw.shape
    hidden, Cin = w1_oihw.shape[0], w1_oihw.shape[1]
    assert Cin == C + 1
    HW = H * W
    P = W + 2                 # lane pad absorbing all +-(W+1) tap shifts
    L = HW + 2 * P

    # Channels-first already == NCHW: no transposes. concat + flatten + pad
    # fuse into a single HBM pass under jit.
    x = jnp.concatenate([feat_nchw, radial_nchw], axis=1).reshape(N, Cin, HW)
    xp = jnp.pad(x, ((0, 0), (0, 0), (P, P)))               # (N, Cin, L)

    # OIHW -> (O, ky, kx, I) -> (O, 9*I); K index = (ky*3+kx)*I + i matches
    # the tap-major / channel-minor im2col ordering. bf16 for the MXU.
    w1m = jnp.transpose(w1_oihw, (0, 2, 3, 1)).reshape(hidden, 9 * Cin)
    w2m = jnp.transpose(w2_oihw, (0, 2, 3, 1)).reshape(C, 9 * hidden)
    w1m = w1m.astype(jnp.bfloat16)
    w2m = w2m.astype(jnp.bfloat16)

    # Column-validity masks for the dx = -1 / dx = +1 taps (flattened conv).
    col = jnp.arange(HW, dtype=jnp.int32) % W
    masks = jnp.stack([(col != 0).astype(jnp.float32),
                       (col != W - 1).astype(jnp.float32)], axis=0)  # (2, HW)

    kernel = functools.partial(ring_enhancer_kernel, W=W, P=P)

    out_flat = pl.pallas_call(
        kernel,
        out_shape=jax.ShapeDtypeStruct((N, C, HW), feat_nchw.dtype),
        grid_spec=pltpu.PrefetchScalarGridSpec(
            num_scalar_prefetch=0,
            grid=(N,),
            in_specs=[
                pl.BlockSpec((1, Cin, L), lambda b: (b, 0, 0)),
                pl.BlockSpec((hidden, 9 * Cin), lambda b: (0, 0)),
                pl.BlockSpec((C, 9 * hidden), lambda b: (0, 0)),
                pl.BlockSpec((2, HW), lambda b: (0, 0)),
            ],
            out_specs=pl.BlockSpec((1, C, HW), lambda b: (b, 0, 0)),
        ),
        compiler_params=pltpu.CompilerParams(
            dimension_semantics=("parallel",),
            vmem_limit_bytes=32 * 1024 * 1024,
        ),
    )(xp, w1m, w2m, masks)

    return out_flat.reshape(N, C, H, W)           # free: splits contiguous dim


def _reference(feat, radial, w1, w2):
    x = jnp.concatenate([feat, radial], axis=1)
    h = lax.conv_general_dilated(x, w1, (1, 1), "SAME",
                                 dimension_numbers=("NCHW", "OIHW", "NCHW"))
    h = jnp.maximum(h, 0.0)
    g = lax.conv_general_dilated(h, w2, (1, 1), "SAME",
                                 dimension_numbers=("NCHW", "OIHW", "NCHW"))
    return feat * jax.nn.sigmoid(g)


if __name__ == "__main__":
    N, C, H, W = 2, 8, 16, 16
    hidden = C // 4                               # hidden_ratio = 4

    key = jax.random.PRNGKey(0)
    k1, k2, k3, k4 = jax.random.split(key, 4)
    feat = jax.random.normal(k1, (N, C, H, W), jnp.float32)
    radial = jax.random.normal(k2, (N, 1, H, W), jnp.float32)

    # deterministic kaiming-uniform-like init (conv weights, no bias)
    bound1 = 1.0 / float((C + 1) * 9) ** 0.5
    bound2 = 1.0 / float(hidden * 9) ** 0.5
    w1 = jax.random.uniform(k3, (hidden, C + 1, 3, 3), jnp.float32,
                            -bound1, bound1)      # conv1: OIHW
    w2 = jax.random.uniform(k4, (C, hidden, 3, 3), jnp.float32,
                            -bound2, bound2)      # conv2: OIHW

    out = jax.block_until_ready(ring_enhancer(feat, radial, w1, w2))

    ref = _reference(feat, radial, w1, w2)
    assert out.shape == (N, C, H, W)
    # bf16 MXU operands (f32 accumulation) -> loosened tolerance vs pure-f32.
    assert jnp.allclose(out, ref, atol=3e-2, rtol=3e-2), \
        float(jnp.max(jnp.abs(out - ref)))
    print("KERNEL_OK")
</pallas_src>

<mosaic_0001>
module attributes {stable_mosaic.version = 11 : i64} {
  func.func @ring_enhancer_kernel(%arg0: i32, %arg1: memref<1x9x292xf32, #tpu.memory_space<vmem>>, %arg2: memref<2x81xbf16, #tpu.memory_space<vmem>>, %arg3: memref<8x18xbf16, #tpu.memory_space<vmem>>, %arg4: memref<2x256xf32, #tpu.memory_space<vmem>>, %arg5: memref<1x8x256xf32, #tpu.memory_space<vmem>>) attributes {dimension_semantics = [#tpu.dimension_semantics<parallel>], iteration_bounds = array<i64: 2>, scalar_prefetch = 0 : i64, scratch_operands = 0 : i64, tpu.core_type = #tpu.core_type<tc>, window_params = [{transform_indices = @transform_0, window_bounds = array<i64: 1, 9, 292>}, {pipeline_mode = #tpu.pipeline_mode<synchronous>, transform_indices = @transform_1, window_bounds = array<i64: 2, 81>}, {pipeline_mode = #tpu.pipeline_mode<synchronous>, transform_indices = @transform_2, window_bounds = array<i64: 8, 18>}, {pipeline_mode = #tpu.pipeline_mode<synchronous>, transform_indices = @transform_3, window_bounds = array<i64: 2, 256>}, {transform_indices = @transform_4, window_bounds = array<i64: 1, 8, 256>}]} {
    %c0 = arith.constant 0 : index
    %c0_0 = arith.constant 0 : index
    %c0_1 = arith.constant 0 : index
    %0 = vector.load %arg1[%c0, %c0_0, %c0_1] : memref<1x9x292xf32, #tpu.memory_space<vmem>>, vector<1x9x292xf32>
    %1 = vector.shape_cast %0 : vector<1x9x292xf32> to vector<9x292xf32>
    %c0_2 = arith.constant 0 : index
    %c0_3 = arith.constant 0 : index
    %2 = vector.load %arg4[%c0_2, %c0_3] : memref<2x256xf32, #tpu.memory_space<vmem>>, vector<1x256xf32>
    %c1 = arith.constant 1 : index
    %c0_4 = arith.constant 0 : index
    %3 = vector.load %arg4[%c1, %c0_4] : memref<2x256xf32, #tpu.memory_space<vmem>>, vector<1x256xf32>
    %4 = vector.extract_strided_slice %1 {offsets = [0, 1], sizes = [9, 256], strides = [1, 1]} : vector<9x292xf32> to vector<9x256xf32>
    %5 = vector.broadcast %2 : vector<1x256xf32> to vector<9x256xf32>
    %6 = arith.mulf %4, %5 : vector<9x256xf32>
    %7 = vector.extract_strided_slice %1 {offsets = [0, 2], sizes = [9, 256], strides = [1, 1]} : vector<9x292xf32> to vector<9x256xf32>
    %8 = vector.extract_strided_slice %1 {offsets = [0, 3], sizes = [9, 256], strides = [1, 1]} : vector<9x292xf32> to vector<9x256xf32>
    %9 = vector.broadcast %3 : vector<1x256xf32> to vector<9x256xf32>
    %10 = arith.mulf %8, %9 : vector<9x256xf32>
    %11 = vector.extract_strided_slice %1 {offsets = [0, 17], sizes = [9, 256], strides = [1, 1]} : vector<9x292xf32> to vector<9x256xf32>
    %12 = vector.broadcast %2 : vector<1x256xf32> to vector<9x256xf32>
    %13 = arith.mulf %11, %12 : vector<9x256xf32>
    %14 = vector.extract_strided_slice %1 {offsets = [0, 18], sizes = [9, 256], strides = [1, 1]} : vector<9x292xf32> to vector<9x256xf32>
    %15 = vector.extract_strided_slice %1 {offsets = [0, 19], sizes = [9, 256], strides = [1, 1]} : vector<9x292xf32> to vector<9x256xf32>
    %16 = vector.broadcast %3 : vector<1x256xf32> to vector<9x256xf32>
    %17 = arith.mulf %15, %16 : vector<9x256xf32>
    %18 = vector.extract_strided_slice %1 {offsets = [0, 33], sizes = [9, 256], strides = [1, 1]} : vector<9x292xf32> to vector<9x256xf32>
    %19 = vector.broadcast %2 : vector<1x256xf32> to vector<9x256xf32>
    %20 = arith.mulf %18, %19 : vector<9x256xf32>
    %21 = vector.extract_strided_slice %1 {offsets = [0, 34], sizes = [9, 256], strides = [1, 1]} : vector<9x292xf32> to vector<9x256xf32>
    %22 = vector.extract_strided_slice %1 {offsets = [0, 35], sizes = [9, 256], strides = [1, 1]} : vector<9x292xf32> to vector<9x256xf32>
    %23 = vector.broadcast %3 : vector<1x256xf32> to vector<9x256xf32>
    %24 = arith.mulf %22, %23 : vector<9x256xf32>
    %25 = tpu.concatenate %6, %7, %10, %13, %14, %17, %20, %21, %24 in 0 : vector<9x256xf32>, vector<9x256xf32>, vector<9x256xf32>, vector<9x256xf32>, vector<9x256xf32>, vector<9x256xf32>, vector<9x256xf32>, vector<9x256xf32>, vector<9x256xf32> -> vector<81x256xf32>
    %26 = arith.truncf %25 : vector<81x256xf32> to vector<81x256xbf16>
    %c0_5 = arith.constant 0 : index
    %c0_6 = arith.constant 0 : index
    %27 = vector.load %arg2[%c0_5, %c0_6] : memref<2x81xbf16, #tpu.memory_space<vmem>>, vector<2x81xbf16>
    %cst = arith.constant dense<0.000000e+00> : vector<2x256xf32>
    %28 = tpu.matmul %27, %26, %cst {dimension_numbers = #tpu.dot_dimension_numbers<[1], [0], [0], [1], [0, 0, 1, 1], [], []>} : vector<2x81xbf16>, vector<81x256xbf16>, vector<2x256xf32> -> vector<2x256xf32>
    %cst_7 = arith.constant 0.000000e+00 : f32
    %29 = vector.broadcast %cst_7 : f32 to vector<2x256xf32>
    %30 = arith.maximumf %28, %29 : vector<2x256xf32>
    %cst_8 = arith.constant 0.000000e+00 : f32
    %31 = vector.broadcast %cst_8 : f32 to vector<2x18xf32>
    %32 = tpu.concatenate %31, %30, %31 in 1 : vector<2x18xf32>, vector<2x256xf32>, vector<2x18xf32> -> vector<2x292xf32>
    %33 = vector.extract_strided_slice %32 {offsets = [0, 1], sizes = [2, 256], strides = [1, 1]} : vector<2x292xf32> to vector<2x256xf32>
    %34 = vector.broadcast %2 : vector<1x256xf32> to vector<2x256xf32>
    %35 = arith.mulf %33, %34 : vector<2x256xf32>
    %36 = vector.extract_strided_slice %32 {offsets = [0, 2], sizes = [2, 256], strides = [1, 1]} : vector<2x292xf32> to vector<2x256xf32>
    %37 = vector.extract_strided_slice %32 {offsets = [0, 3], sizes = [2, 256], strides = [1, 1]} : vector<2x292xf32> to vector<2x256xf32>
    %38 = vector.broadcast %3 : vector<1x256xf32> to vector<2x256xf32>
    %39 = arith.mulf %37, %38 : vector<2x256xf32>
    %40 = vector.extract_strided_slice %32 {offsets = [0, 17], sizes = [2, 256], strides = [1, 1]} : vector<2x292xf32> to vector<2x256xf32>
    %41 = vector.broadcast %2 : vector<1x256xf32> to vector<2x256xf32>
    %42 = arith.mulf %40, %41 : vector<2x256xf32>
    %43 = vector.extract_strided_slice %32 {offsets = [0, 18], sizes = [2, 256], strides = [1, 1]} : vector<2x292xf32> to vector<2x256xf32>
    %44 = vector.extract_strided_slice %32 {offsets = [0, 19], sizes = [2, 256], strides = [1, 1]} : vector<2x292xf32> to vector<2x256xf32>
    %45 = vector.broadcast %3 : vector<1x256xf32> to vector<2x256xf32>
    %46 = arith.mulf %44, %45 : vector<2x256xf32>
    %47 = vector.extract_strided_slice %32 {offsets = [0, 33], sizes = [2, 256], strides = [1, 1]} : vector<2x292xf32> to vector<2x256xf32>
    %48 = vector.broadcast %2 : vector<1x256xf32> to vector<2x256xf32>
    %49 = arith.mulf %47, %48 : vector<2x256xf32>
    %50 = vector.extract_strided_slice %32 {offsets = [0, 34], sizes = [2, 256], strides = [1, 1]} : vector<2x292xf32> to vector<2x256xf32>
    %51 = vector.extract_strided_slice %32 {offsets = [0, 35], sizes = [2, 256], strides = [1, 1]} : vector<2x292xf32> to vector<2x256xf32>
    %52 = vector.broadcast %3 : vector<1x256xf32> to vector<2x256xf32>
    %53 = arith.mulf %51, %52 : vector<2x256xf32>
    %54 = tpu.concatenate %35, %36, %39, %42, %43, %46, %49, %50, %53 in 0 : vector<2x256xf32>, vector<2x256xf32>, vector<2x256xf32>, vector<2x256xf32>, vector<2x256xf32>, vector<2x256xf32>, vector<2x256xf32>, vector<2x256xf32>, vector<2x256xf32> -> vector<18x256xf32>
    %55 = arith.truncf %54 : vector<18x256xf32> to vector<18x256xbf16>
    %c0_9 = arith.constant 0 : index
    %c0_10 = arith.constant 0 : index
    %56 = vector.load %arg3[%c0_9, %c0_10] : memref<8x18xbf16, #tpu.memory_space<vmem>>, vector<8x18xbf16>
    %cst_11 = arith.constant dense<0.000000e+00> : vector<8x256xf32>
    %57 = tpu.matmul %56, %55, %cst_11 {dimension_numbers = #tpu.dot_dimension_numbers<[1], [0], [0], [1], [0, 0, 1, 1], [], []>} : vector<8x18xbf16>, vector<18x256xbf16>, vector<8x256xf32> -> vector<8x256xf32>
    %58 = arith.negf %57 : vector<8x256xf32>
    %59 = math.exp %58 : vector<8x256xf32>
    %cst_12 = arith.constant 1.000000e+00 : f32
    %60 = vector.broadcast %cst_12 : f32 to vector<8x256xf32>
    %61 = arith.addf %60, %59 : vector<8x256xf32>
    %62 = arith.divf %60, %61 : vector<8x256xf32>
    %63 = vector.extract_strided_slice %1 {offsets = [0, 18], sizes = [8, 256], strides = [1, 1]} : vector<9x292xf32> to vector<8x256xf32>
    %64 = arith.mulf %63, %62 : vector<8x256xf32>
    %c0_13 = arith.constant 0 : index
    %c0_14 = arith.constant 0 : index
    %c0_15 = arith.constant 0 : index
    %65 = vector.load %arg5[%c0_13, %c0_14, %c0_15] : memref<1x8x256xf32, #tpu.memory_space<vmem>>, vector<1x8x256xf32>
    %66 = vector.shape_cast %65 : vector<1x8x256xf32> to vector<8x256xf32>
    %67 = vector.shape_cast %64 : vector<8x256xf32> to vector<1x8x256xf32>
    tpu.vector_store %arg5[%c0_13, %c0_14, %c0_15], %67 {strides = array<i32>} : memref<1x8x256xf32, #tpu.memory_space<vmem>>, vector<1x8x256xf32>,
    return
  }
  func.func @transform_0(%arg0: i32) -> (i32, i32, i32) {
    %c0_i32 = arith.constant 0 : i32
    %c0_i32_0 = arith.constant 0 : i32
    %c0_i32_1 = arith.constant 0 : i32
    return %arg0, %c0_i32, %c0_i32_0 : i32, i32, i32
  }
  func.func @transform_1(%arg0: i32) -> (i32, i32) {
    %c0_i32 = arith.constant 0 : i32
    %c0_i32_0 = arith.constant 0 : i32
    %c0_i32_1 = arith.constant 0 : i32
    return %c0_i32, %c0_i32_0 : i32, i32
  }
  func.func @transform_2(%arg0: i32) -> (i32, i32) {
    %c0_i32 = arith.constant 0 : i32
    %c0_i32_0 = arith.constant 0 : i32
    %c0_i32_1 = arith.constant 0 : i32
    return %c0_i32, %c0_i32_0 : i32, i32
  }
  func.func @transform_3(%arg0: i32) -> (i32, i32) {
    %c0_i32 = arith.constant 0 : i32
    %c0_i32_0 = arith.constant 0 : i32
    %c0_i32_1 = arith.constant 0 : i32
    return %c0_i32, %c0_i32_0 : i32, i32
  }
  func.func @transform_4(%arg0: i32) -> (i32, i32, i32) {
    %c0_i32 = arith.constant 0 : i32
    %c0_i32_0 = arith.constant 0 : i32
    %c0_i32_1 = arith.constant 0 : i32
    return %arg0, %c0_i32, %c0_i32_0 : i32, i32, i32
  }
}

</mosaic_0001>

<llo_original>
// kernel: ring_enhancer.1
$region0: #{ring_enhancer.1}
  #allocation0 [shape = 'u32[]', space=smem, size = 0x4, offset = 0x4, fixed_abs, tag = 'smem constant byte address 0x4 - core index']
  #allocation1 [shape = 'u32[72,128]{1,0:T(1,128)}', space=vmem, size = 0x9000, scoped, tag = 'internal scratch']
  %s0 = inlined_call_operand.vmem [shape: f32[2,9,292], index: 0, kind: input, shape index: {}]
  %s1 = inlined_call_operand.vmem [shape: bf16[2,81], index: 1, kind: input, shape index: {}]
  %s2 = inlined_call_operand.vmem [shape: bf16[8,18], index: 2, kind: input, shape index: {}]
  %s3 = inlined_call_operand.vmem [shape: f32[2,256], index: 3, kind: input, shape index: {}]
  %s4 = inlined_call_operand.vmem [shape: f32[2,8,256], index: 4, kind: output, shape index: {}]
  %s5 = sld [smem:[#allocation0]]
  $region49: #{ring_enhancer.1} parent=0
    _
  %s7 = ssub.s32 1, %s5
  %s8 = scalar_select 0, %s7, %s5
  loop: start=0, step=1, limit=4
  $region2: #{ring_enhancer.1} parent=0 // loop_pre_header
    _
  $region3: #{ring_enhancer.1} parent=0 // loop_header
    %s10 = sphi 0, %s14
    %p11 = scmp.ge.s32.totalorder %s10, 4
    %s20 = sphi 0, %s22
    %s23 = sphi 0, %s20
    %s24 = sphi 0, %s23
    %s40 = sphi 0, %s24
    %s44 = sphi 0, %s44
    %s46 = sphi 0, %s44
    %s47 = sphi 0, %s46
    %s61 = sphi 0, %s47
    %s65 = sphi 0, %s65
    %s67 = sphi 0, %s65
    %s68 = sphi 0, %s67
    %s82 = sphi 0, %s68
    %s86 = sphi 0, %s86
    %s88 = sphi 0, %s86
    %s89 = sphi 0, %s88
    %s103 = sphi 0, %s89
    %s109 = sphi 0, %s111
    %s112 = sphi 0, %s109
    %s113 = sphi 0, %s112
    %s129 = sphi 0, %s113
  $region4: #{ring_enhancer.1} parent=0 // loop_header_branch
    %13 = sbr.rel (%p11) target = $region8
  $region5: #{ring_enhancer.1} parent=0 // loop_body
    %s15 = ssub.s32 %s10, 1
    %s16 = ssub.s32 %s10, 2
    %s17 = sadd.s32 %s10, 1
    %s18 = ssub.s32 %s10, %s17
    %p19 = scmp.eq.s32.totalorder %s18, 0
    %s21 = sadd.s32 %s20, 1
    %s22 = scalar_select %p19, %s20, %s21
    %p25 = pneg %p19
    %p26 = scmp.eq.s32.totalorder %s10, 1
    %p27 = por %p25, %p26
    %p28 = scmp.ne.s32.totalorder %s20, %s23
    %p29 = scmp.eq.s32.totalorder %s10, 0
    %p30 = por %p28, %p29
    %p31 = scmp.ne.s32.totalorder %s20, %s23
    %p32 = scmp.eq.s32.totalorder %s15, 1
    %p33 = por %p31, %p32
    %p34 = scmp.ne.s32.totalorder %s23, %s24
    %p35 = scmp.eq.s32.totalorder %s15, 0
    %p36 = por %p34, %p35
    %p37 = scmp.ne.s32.totalorder %s23, %s24
    %p38 = scmp.eq.s32.totalorder %s16, 1
    %p39 = por %p37, %p38
    %p41 = scmp.ne.s32.totalorder %s24, %s40
    %p42 = scmp.eq.s32.totalorder %s16, 0
    %p43 = por %p41, %p42
    %s45 = sadd.s32 %s44, 1
    %p48 = scmp.eq.s32.totalorder %s10, 1
    %p49 = scmp.ne.s32.totalorder %s44, %s46
    %p50 = scmp.eq.s32.totalorder %s10, 0
    %p51 = por %p49, %p50
    %p52 = scmp.ne.s32.totalorder %s44, %s46
    %p53 = scmp.eq.s32.totalorder %s15, 1
    %p54 = por %p52, %p53
    %p55 = scmp.ne.s32.totalorder %s46, %s47
    %p56 = scmp.eq.s32.totalorder %s15, 0
    %p57 = por %p55, %p56
    %p58 = scmp.ne.s32.totalorder %s46, %s47
    %p59 = scmp.eq.s32.totalorder %s16, 1
    %p60 = por %p58, %p59
    %p62 = scmp.ne.s32.totalorder %s47, %s61
    %p63 = scmp.eq.s32.totalorder %s16, 0
    %p64 = por %p62, %p63
    %s66 = sadd.s32 %s65, 1
    %p69 = scmp.eq.s32.totalorder %s10, 1
    %p70 = scmp.ne.s32.totalorder %s65, %s67
    %p71 = scmp.eq.s32.totalorder %s10, 0
    %p72 = por %p70, %p71
    %p73 = scmp.ne.s32.totalorder %s65, %s67
    %p74 = scmp.eq.s32.totalorder %s15, 1
    %p75 = por %p73, %p74
    %p76 = scmp.ne.s32.totalorder %s67, %s68
    %p77 = scmp.eq.s32.totalorder %s15, 0
    %p78 = por %p76, %p77
    %p79 = scmp.ne.s32.totalorder %s67, %s68
    %p80 = scmp.eq.s32.totalorder %s16, 1
    %p81 = por %p79, %p80
    %p83 = scmp.ne.s32.totalorder %s68, %s82
    %p84 = scmp.eq.s32.totalorder %s16, 0
    %p85 = por %p83, %p84
    %s87 = sadd.s32 %s86, 1
    %p90 = scmp.eq.s32.totalorder %s10, 1
    %p91 = scmp.ne.s32.totalorder %s86, %s88
    %p92 = scmp.eq.s32.totalorder %s10, 0
    %p93 = por %p91, %p92
    %p94 = scmp.ne.s32.totalorder %s86, %s88
    %p95 = scmp.eq.s32.totalorder %s15, 1
    %p96 = por %p94, %p95
    %p97 = scmp.ne.s32.totalorder %s88, %s89
    %p98 = scmp.eq.s32.totalorder %s15, 0
    %p99 = por %p97, %p98
    %p100 = scmp.ne.s32.totalorder %s88, %s89
    %p101 = scmp.eq.s32.totalorder %s16, 1
    %p102 = por %p100, %p101
    %p104 = scmp.ne.s32.totalorder %s89, %s103
    %p105 = scmp.eq.s32.totalorder %s16, 0
    %p106 = por %p104, %p105
    %s107 = ssub.s32 %s10, %s17
    %p108 = scmp.eq.s32.totalorder %s107, 0
    %s110 = sadd.s32 %s109, 1
    %s111 = scalar_select %p108, %s109, %s110
    %p114 = pneg %p108
    %p115 = scmp.eq.s32.totalorder %s10, 1
    %p116 = por %p114, %p115
    %p117 = scmp.ne.s32.totalorder %s109, %s112
    %p118 = scmp.eq.s32.totalorder %s10, 0
    %p119 = por %p117, %p118
    %p120 = scmp.ne.s32.totalorder %s109, %s112
    %p121 = scmp.eq.s32.totalorder %s15, 1
    %p122 = por %p120, %p121
    %p123 = scmp.ne.s32.totalorder %s112, %s113
    %p124 = scmp.eq.s32.totalorder %s15, 0
    %p125 = por %p123, %p124
    %p126 = scmp.ne.s32.totalorder %s112, %s113
    %p127 = scmp.eq.s32.totalorder %s16, 1
    %p128 = por %p126, %p127
    %p130 = scmp.ne.s32.totalorder %s113, %s129
    %p131 = scmp.eq.s32.totalorder %s16, 0
    %p132 = por %p130, %p131
    %p133 = scmp.le.s32.totalorder 1, %s10
    %p134 = scmp.lt.s32.totalorder %s10, 3
    %p135 = pnand %p133, %p134
    %p136 = pneg %p135
    // Predicated region
    $region9: #{ring_enhancer.1} parent=5 // pred_check
      _
    $region10: #{ring_enhancer.1} parent=5 // pred_check_branch
      %138 = sbr.rel (%p135) target = $region12
    $region11: #{ring_enhancer.1} parent=5 // pred_region
      %s139 = ssub.s32 %s10, 1
      // Predicated region
      $region13: #{ring_enhancer.1} parent=11 // pred_check
        %p140 = pneg %p57
      $region14: #{ring_enhancer.1} parent=11 // pred_check_branch
        %142 = sbr.rel (%p140) target = $region16
      $region15: #{ring_enhancer.1} parent=11 // pred_region
        _
      $region16: #{ring_enhancer.1} parent=11 // pred_fallthru
        _
      // Predicated region
      $region17: #{ring_enhancer.1} parent=11 // pred_check
        %p143 = pneg %p78
      $region18: #{ring_enhancer.1} parent=11 // pred_check_branch
        %145 = sbr.rel (%p143) target = $region20
      $region19: #{ring_enhancer.1} parent=11 // pred_region
        _
      $region20: #{ring_enhancer.1} parent=11 // pred_fallthru
        _
      // Predicated region
      $region21: #{ring_enhancer.1} parent=11 // pred_check
        %p146 = pneg %p99
      $region22: #{ring_enhancer.1} parent=11 // pred_check_branch
        %148 = sbr.rel (%p146) target = $region24
      $region23: #{ring_enhancer.1} parent=11 // pred_region
        _
      $region24: #{ring_enhancer.1} parent=11 // pred_fallthru
        _
    $region12: #{ring_enhancer.1} parent=5 // pred_fallthru
      _
    %p149 = scmp.lt.s32.totalorder %s10, 2
    // Predicated region
    $region25: #{ring_enhancer.1} parent=5 // pred_check
      %p150 = pneg %p149
    $region26: #{ring_enhancer.1} parent=5 // pred_check_branch
      %152 = sbr.rel (%p150) target = $region28
    $region27: #{ring_enhancer.1} parent=5 // pred_region
      // Predicated region
      $region29: #{ring_enhancer.1} parent=27 // pred_check
        %p153 = pneg %p30
      $region30: #{ring_enhancer.1} parent=27 // pred_check_branch
        %155 = sbr.rel (%p153) target = $region32
      $region31: #{ring_enhancer.1} parent=27 // pred_region
        %p156 = scmp.lt.s32.totalorder %s10, 1
        %s157 = scalar_select %p156, %s10, 1
        %s158 = smul.addr %s157, 6
        %s159 = smul.addr %s158, 8
        %s160 = scalar_lea.vmem %s0, %s159
      $region32: #{ring_enhancer.1} parent=27 // pred_fallthru
        _
    $region28: #{ring_enhancer.1} parent=5 // pred_fallthru
      _
    %p161 = scmp.le.s32.totalorder 1, %s10
    %p162 = scmp.lt.s32.totalorder %s10, 3
    %p163 = pnand %p161, %p162
    %p164 = pneg %p163
    // Predicated region
    $region33: #{ring_enhancer.1} parent=5 // pred_check
      _
    $region34: #{ring_enhancer.1} parent=5 // pred_check_branch
      %166 = sbr.rel (%p163) target = $region36
    $region35: #{ring_enhancer.1} parent=5 // pred_region
      %s167 = ssub.s32 %s10, 1
      %p168 = scmp.lt.s32.totalorder %s15, 1
      %s169 = scalar_select %p168, %s15, 1
      %s170 = smul.addr %s169, 6
      %s171 = smul.addr %s170, 8
      %s172 = scalar_lea.vmem %s0, %s171
      %p173 = pneg %p36
      %p174 = pneg %p33
      %p175 = pneg %p57
      %p176 = pneg %p54
      %p177 = pneg %p78
      %p178 = pneg %p75
      %p179 = pneg %p99
      %p180 = pneg %p96
      %p181 = pneg %p125
      %p182 = pneg %p122
      %p183 = scmp.lt.s32.totalorder %s15, 1
      %s184 = scalar_select %p183, %s15, 1
      %s185 = smul.addr %s184, 2
      %s186 = smul.addr %s185, 8
      %s187 = scalar_lea.vmem %s4, %s186
      %p188 = scmp.lt.s32.totalorder %s15, 1
      %s189 = scalar_select %p188, %s15, 1
      %s190 = smul.addr %s189, 6
      %s191 = smul.addr %s190, 8
      %s192 = scalar_lea.vmem %s0, %s191
      %p193 = scmp.lt.s32.totalorder %s15, 1
      %s194 = scalar_select %p193, %s15, 1
      %s195 = smul.addr %s194, 2
      %s196 = smul.addr %s195, 8
      %s197 = scalar_lea.vmem %s4, %s196
      %v199 = vld [vmem:[%s192] sm:$0xff]
      %v200 = vld [vmem:[%s192 + $0x8] sm:$0xff]
      %v201 = vld [vmem:[%s192 + $0x10] sm:$0xff]
      %v202 = vld [vmem:[%s192 + $0x18] sm:$0x1]
      %v203 = vld [vmem:[%s192 + $0x20] sm:$0x1]
      %v204 = vld [vmem:[%s192 + $0x28] sm:$0x1]
      %v205 = vld [vmem:[%s3] ss:$2 sm:$0x3]
      %s206 = scalar_lea.vmem %s3, 1
      %v207 = vld [vmem:[%s206] ss:$2 sm:$0x3]
      %v209 = vperm.slane %v205, 0
      %v210 = vperm.slane %v205, 1
      %211 = vrot.lane.b32.xlu0 %v209, 1
      %v212 = vpop.permute.xlu0 %211
      %213 = vrot.lane.b32.xlu0 %v210, 1
      %v214 = vpop.permute.xlu0 %213
      %vm215 = vcmask 7168
      %v216 = vsel %vm215, %v212, %v214
      %v220 = vmul.f32 %v199, %v212
      %v221 = vmul.f32 %v200, %v216
      %v222 = vmul.f32 %v201, %v214
      %v223 = vmul.f32 %v202, %v212
      %v224 = vmul.f32 %v203, %v216
      %v225 = vmul.f32 %v204, %v214
      %v227 = vperm.slane %v207, 0
      %v228 = vperm.slane %v207, 1
      %229 = vrot.lane.b32.xlu0 %v227, 3
      %v230 = vpop.permute.xlu0 %229
      %231 = vrot.lane.b32.xlu0 %v228, 3
      %v232 = vpop.permute.xlu0 %231
      %vm233 = vcmask 23552
      %v234 = vsel %vm233, %v230, %v232
      %v238 = vmul.f32 %v199, %v230
      %v239 = vmul.f32 %v200, %v234
      %v240 = vmul.f32 %v201, %v232
      %v241 = vmul.f32 %v202, %v230
      %v242 = vmul.f32 %v203, %v234
      %v243 = vmul.f32 %v204, %v232
      %244 = vrot.lane.b32.xlu0 %v209, 17
      %v245 = vpop.permute.xlu0 %244
      %246 = vrot.lane.b32.xlu0 %v210, 17
      %v247 = vpop.permute.xlu0 %246
      %vm248 = vcmask 138240
      %v249 = vsel %vm248, %v245, %v247
      %v253 = vmul.f32 %v199, %v245
      %v254 = vmul.f32 %v200, %v249
      %v255 = vmul.f32 %v201, %v247
      %v256 = vmul.f32 %v202, %v245
      %v257 = vmul.f32 %v203, %v249
      %v258 = vmul.f32 %v204, %v247
      %259 = vrot.lane.b32.xlu0 %v227, 19
      %v260 = vpop.permute.xlu0 %259
      %261 = vrot.lane.b32.xlu0 %v228, 19
      %v262 = vpop.permute.xlu0 %261
      %vm263 = vcmask 154624
      %v264 = vsel %vm263, %v260, %v262
      %v268 = vmul.f32 %v199, %v260
      %v269 = vmul.f32 %v200, %v264
      %v270 = vmul.f32 %v201, %v262
      %v271 = vmul.f32 %v202, %v260
      %v272 = vmul.f32 %v203, %v264
      %v273 = vmul.f32 %v204, %v262
      %274 = vrot.lane.b32.xlu0 %v209, 33
      %v275 = vpop.permute.xlu0 %274
      %276 = vrot.lane.b32.xlu0 %v210, 33
      %v277 = vpop.permute.xlu0 %276
      %vm278 = vcmask 269312
      %v279 = vsel %vm278, %v275, %v277
      %v283 = vmul.f32 %v199, %v275
      %v284 = vmul.f32 %v200, %v279
      %v285 = vmul.f32 %v201, %v277
      %v286 = vmul.f32 %v202, %v275
      %v287 = vmul.f32 %v203, %v279
      %v288 = vmul.f32 %v204, %v277
      %289 = vrot.lane.b32.xlu0 %v227, 35
      %v290 = vpop.permute.xlu0 %289
      %291 = vrot.lane.b32.xlu0 %v228, 35
      %v292 = vpop.permute.xlu0 %291
      %vm293 = vcmask 285696
      %v294 = vsel %vm293, %v290, %v292
      %v298 = vmul.f32 %v199, %v290
      %v299 = vmul.f32 %v200, %v294
      %v300 = vmul.f32 %v201, %v292
      %v301 = vmul.f32 %v202, %v290
      %v302 = vmul.f32 %v203, %v294
      %v303 = vmul.f32 %v204, %v292
      %vm310 = vcmask 1040384
      %v311 = vrot.slane %v199, 7
      %v312 = vrot.slane %v200, 7
      %v313 = vrot.slane %v201, 7
      %v314 = vrot.slane %v202, 7
      %v315 = vsel %vm310, %v311, %v314
      %v316 = vrot.slane %v203, 7
      %v317 = vsel %vm310, %v312, %v316
      %v318 = vrot.slane %v204, 7
      %v319 = vsel %vm310, %v313, %v318
      %320 = vrot.lane.b32.xlu0 %v311, 127
      %v321 = vpop.permute.xlu0 %320
      %322 = vrot.lane.b32.xlu0 %v312, 127
      %v323 = vpop.permute.xlu0 %322
      %324 = vrot.lane.b32.xlu0 %v313, 127
      %v325 = vpop.permute.xlu0 %324
      %326 = vrot.lane.b32.xlu0 %v315, 127
      %v327 = vpop.permute.xlu0 %326
      %328 = vrot.lane.b32.xlu0 %v317, 127
      %v329 = vpop.permute.xlu0 %328
      %330 = vrot.lane.b32.xlu0 %v319, 127
      %v331 = vpop.permute.xlu0 %330
      %vm332 = vcmask 1039360
      %v333 = vsel %vm332, %v321, %v323
      %v334 = vsel %vm332, %v323, %v325
      %v335 = vsel %vm332, %v327, %v329
      %v336 = vsel %vm332, %v329, %v331
      %vm349 = vcmask 1041408
      %v350 = vrot.slane %v238, 6
      %v351 = vrot.slane %v239, 6
      %v352 = vrot.slane %v240, 6
      %v353 = vrot.slane %v241, 6
      %v354 = vsel %vm349, %v350, %v353
      %v355 = vrot.slane %v242, 6
      %v356 = vsel %vm349, %v351, %v355
      %v357 = vrot.slane %v243, 6
      %v358 = vsel %vm349, %v352, %v357
      %359 = vrot.lane.b32.xlu0 %v350, 126
      %v360 = vpop.permute.xlu0 %359
      %361 = vrot.lane.b32.xlu0 %v351, 126
      %v362 = vpop.permute.xlu0 %361
      %363 = vrot.lane.b32.xlu0 %v352, 126
      %v364 = vpop.permute.xlu0 %363
      %365 = vrot.lane.b32.xlu0 %v354, 126
      %v366 = vpop.permute.xlu0 %365
      %367 = vrot.lane.b32.xlu0 %v356, 126
      %v368 = vpop.permute.xlu0 %367
      %369 = vrot.lane.b32.xlu0 %v358, 126
      %v370 = vpop.permute.xlu0 %369
      %vm371 = vcmask 1031168
      %v372 = vsel %vm371, %v360, %v362
      %v373 = vsel %vm371, %v362, %v364
      %v374 = vsel %vm371, %v366, %v368
      %v375 = vsel %vm371, %v368, %v370
      %vm388 = vcmask 1042432
      %v389 = vrot.slane %v253, 5
      %v390 = vrot.slane %v254, 5
      %v391 = vrot.slane %v255, 5
      %v392 = vrot.slane %v256, 5
      %v393 = vsel %vm388, %v389, %v392
      %v394 = vrot.slane %v257, 5
      %v395 = vsel %vm388, %v390, %v394
      %v396 = vrot.slane %v258, 5
      %v397 = vsel %vm388, %v391, %v396
      %398 = vrot.lane.b32.xlu0 %v389, 112
      %v399 = vpop.permute.xlu0 %398
      %400 = vrot.lane.b32.xlu0 %v390, 112
      %v401 = vpop.permute.xlu0 %400
      %402 = vrot.lane.b32.xlu0 %v391, 112
      %v403 = vpop.permute.xlu0 %402
      %404 = vrot.lane.b32.xlu0 %v393, 112
      %v405 = vpop.permute.xlu0 %404
      %406 = vrot.lane.b32.xlu0 %v395, 112
      %v407 = vpop.permute.xlu0 %406
      %408 = vrot.lane.b32.xlu0 %v397, 112
      %v409 = vpop.permute.xlu0 %408
      %vm410 = vcmask 916480
      %v411 = vsel %vm410, %v399, %v401
      %v412 = vsel %vm410, %v401, %v403
      %v413 = vsel %vm410, %v405, %v407
      %v414 = vsel %vm410, %v407, %v409
      %vm421 = vcmask 1043456
      %v422 = vrot.slane %v199, 4
      %v423 = vrot.slane %v200, 4
      %v424 = vrot.slane %v201, 4
      %v425 = vrot.slane %v202, 4
      %v426 = vsel %vm421, %v422, %v425
      %v427 = vrot.slane %v203, 4
      %v428 = vsel %vm421, %v423, %v427
      %v429 = vrot.slane %v204, 4
      %v430 = vsel %vm421, %v424, %v429
      %431 = vrot.lane.b32.xlu0 %v422, 111
      %v432 = vpop.permute.xlu0 %431
      %433 = vrot.lane.b32.xlu0 %v423, 111
      %v434 = vpop.permute.xlu0 %433
      %435 = vrot.lane.b32.xlu0 %v424, 111
      %v436 = vpop.permute.xlu0 %435
      %437 = vrot.lane.b32.xlu0 %v426, 111
      %v438 = vpop.permute.xlu0 %437
      %439 = vrot.lane.b32.xlu0 %v428, 111
      %v440 = vpop.permute.xlu0 %439
      %441 = vrot.lane.b32.xlu0 %v430, 111
      %v442 = vpop.permute.xlu0 %441
      %vm443 = vcmask 908288
      %v444 = vsel %vm443, %v432, %v434
      %v445 = vsel %vm443, %v434, %v436
      %v446 = vsel %vm443, %v438, %v440
      %v447 = vsel %vm443, %v440, %v442
      %vm460 = vcmask 1044480
      %v461 = vrot.slane %v268, 3
      %v462 = vrot.slane %v269, 3
      %v463 = vrot.slane %v270, 3
      %v464 = vrot.slane %v271, 3
      %v465 = vsel %vm460, %v461, %v464
      %v466 = vrot.slane %v272, 3
      %v467 = vsel %vm460, %v462, %v466
      %v468 = vrot.slane %v273, 3
      %v469 = vsel %vm460, %v463, %v468
      %470 = vrot.lane.b32.xlu0 %v461, 110
      %v471 = vpop.permute.xlu0 %470
      %472 = vrot.lane.b32.xlu0 %v462, 110
      %v473 = vpop.permute.xlu0 %472
      %474 = vrot.lane.b32.xlu0 %v463, 110
      %v475 = vpop.permute.xlu0 %474
      %476 = vrot.lane.b32.xlu0 %v465, 110
      %v477 = vpop.permute.xlu0 %476
      %478 = vrot.lane.b32.xlu0 %v467, 110
      %v479 = vpop.permute.xlu0 %478
      %480 = vrot.lane.b32.xlu0 %v469, 110
      %v481 = vpop.permute.xlu0 %480
      %vm482 = vcmask 900096
      %v483 = vsel %vm482, %v471, %v473
      %v484 = vsel %vm482, %v473, %v475
      %v485 = vsel %vm482, %v477, %v479
      %v486 = vsel %vm482, %v479, %v481
      %vm499 = vcmask 1045504
      %v500 = vrot.slane %v283, 2
      %v501 = vrot.slane %v284, 2
      %v502 = vrot.slane %v285, 2
      %v503 = vrot.slane %v286, 2
      %v504 = vsel %vm499, %v500, %v503
      %v505 = vrot.slane %v287, 2
      %v506 = vsel %vm499, %v501, %v505
      %v507 = vrot.slane %v288, 2
      %v508 = vsel %vm499, %v502, %v507
      %509 = vrot.lane.b32.xlu0 %v500, 96
      %v510 = vpop.permute.xlu0 %509
      %511 = vrot.lane.b32.xlu0 %v501, 96
      %v512 = vpop.permute.xlu0 %511
      %513 = vrot.lane.b32.xlu0 %v502, 96
      %v514 = vpop.permute.xlu0 %513
      %515 = vrot.lane.b32.xlu0 %v504, 96
      %v516 = vpop.permute.xlu0 %515
      %517 = vrot.lane.b32.xlu0 %v506, 96
      %v518 = vpop.permute.xlu0 %517
      %519 = vrot.lane.b32.xlu0 %v508, 96
      %v520 = vpop.permute.xlu0 %519
      %vm521 = vcmask 785408
      %v522 = vsel %vm521, %v510, %v512
      %v523 = vsel %vm521, %v512, %v514
      %v524 = vsel %vm521, %v516, %v518
      %v525 = vsel %vm521, %v518, %v520
      %vm532 = vcmask 1046528
      %v533 = vrot.slane %v199, 1
      %v534 = vrot.slane %v200, 1
      %v535 = vrot.slane %v201, 1
      %v536 = vrot.slane %v202, 1
      %v537 = vsel %vm532, %v533, %v536
      %v538 = vrot.slane %v203, 1
      %v539 = vsel %vm532, %v534, %v538
      %v540 = vrot.slane %v204, 1
      %v541 = vsel %vm532, %v535, %v540
      %542 = vrot.lane.b32.xlu0 %v533, 95
      %v543 = vpop.permute.xlu0 %542
      %544 = vrot.lane.b32.xlu0 %v534, 95
      %v545 = vpop.permute.xlu0 %544
      %546 = vrot.lane.b32.xlu0 %v535, 95
      %v547 = vpop.permute.xlu0 %546
      %548 = vrot.lane.b32.xlu0 %v537, 95
      %v549 = vpop.permute.xlu0 %548
      %550 = vrot.lane.b32.xlu0 %v539, 95
      %v551 = vpop.permute.xlu0 %550
      %552 = vrot.lane.b32.xlu0 %v541, 95
      %v553 = vpop.permute.xlu0 %552
      %vm554 = vcmask 777216
      %v555 = vsel %vm554, %v543, %v545
      %v556 = vsel %vm554, %v545, %v547
      %v557 = vsel %vm554, %v549, %v551
      %v558 = vsel %vm554, %v551, %v553
      %571 = vrot.lane.b32.xlu0 %v298, 94
      %v572 = vpop.permute.xlu0 %571
      %573 = vrot.lane.b32.xlu0 %v299, 94
      %v574 = vpop.permute.xlu0 %573
      %575 = vrot.lane.b32.xlu0 %v300, 94
      %v576 = vpop.permute.xlu0 %575
      %577 = vrot.lane.b32.xlu0 %v301, 94
      %v578 = vpop.permute.xlu0 %577
      %579 = vrot.lane.b32.xlu0 %v302, 94
      %v580 = vpop.permute.xlu0 %579
      %581 = vrot.lane.b32.xlu0 %v303, 94
      %v582 = vpop.permute.xlu0 %581
      %vm583 = vcmask 769024
      %v584 = vsel %vm583, %v572, %v574
      %v585 = vsel %vm583, %v574, %v576
      %v586 = vsel %vm583, %v578, %v580
      %v587 = vsel %vm583, %v580, %v582
      %v594 = vsel %vm310, %v223, %v333
      %v595 = vsel %vm310, %v224, %v334
      %v596 = vsel %vm310, %v225, %v325
      %v597 = vsel %vm349, %v335, %v372
      %v598 = vsel %vm349, %v336, %v373
      %v599 = vsel %vm349, %v331, %v364
      %v600 = vsel %vm388, %v374, %v411
      %v601 = vsel %vm388, %v375, %v412
      %v602 = vsel %vm388, %v370, %v403
      %v603 = vsel %vm421, %v413, %v444
      %v604 = vsel %vm421, %v414, %v445
      %v605 = vsel %vm421, %v409, %v436
      %v606 = vsel %vm460, %v446, %v483
      %v607 = vsel %vm460, %v447, %v484
      %v608 = vsel %vm460, %v442, %v475
      %v609 = vsel %vm499, %v485, %v522
      %v610 = vsel %vm499, %v486, %v523
      %v611 = vsel %vm499, %v481, %v514
      %v612 = vsel %vm532, %v524, %v555
      %v613 = vsel %vm532, %v525, %v556
      %v614 = vsel %vm532, %v520, %v547
      %v615 = vpack.c.bf16 %v594, %v220
      %v616 = vpack.c.bf16 %v595, %v221
      %v617 = vpack.c.bf16 %v596, %v222
      %v618 = vpack.c.bf16 %v600, %v597
      %v619 = vpack.c.bf16 %v601, %v598
      %v620 = vpack.c.bf16 %v602, %v599
      %v621 = vpack.c.bf16 %v606, %v603
      %v622 = vpack.c.bf16 %v607, %v604
      %v623 = vpack.c.bf16 %v608, %v605
      %v624 = vpack.c.bf16 %v612, %v609
      %v625 = vpack.c.bf16 %v613, %v610
      %v626 = vpack.c.bf16 %v614, %v611
      %v627 = vpack.c.bf16 %v584, %v557
      %v628 = vpack.c.bf16 %v585, %v558
      %v629 = vpack.c.bf16 %v576, %v553
      %v630 = vpack.c.bf16 %v586, %v586
      %v631 = vpack.c.bf16 %v587, %v587
      %v632 = vpack.c.bf16 %v582, %v582
      %v633 = vld [vmem:[%s1] sm:$0x1]
      %652 = vrot.lane.b32.xlu0 %v615, 127
      %v653 = vpop.permute.xlu0 %652
      %654 = vrot.lane.b32.xlu0 %v616, 127
      %v655 = vpop.permute.xlu0 %654
      %656 = vrot.lane.b32.xlu0 %v617, 127
      %v657 = vpop.permute.xlu0 %656
      %658 = vrot.lane.b32.xlu0 %v618, 127
      %v659 = vpop.permute.xlu0 %658
      %660 = vrot.lane.b32.xlu0 %v619, 127
      %v661 = vpop.permute.xlu0 %660
      %662 = vrot.lane.b32.xlu0 %v620, 127
      %v663 = vpop.permute.xlu0 %662
      %664 = vrot.lane.b32.xlu0 %v621, 127
      %v665 = vpop.permute.xlu0 %664
      %666 = vrot.lane.b32.xlu0 %v622, 127
      %v667 = vpop.permute.xlu0 %666
      %668 = vrot.lane.b32.xlu0 %v623, 127
      %v669 = vpop.permute.xlu0 %668
      %670 = vrot.lane.b32.xlu0 %v624, 127
      %v671 = vpop.permute.xlu0 %670
      %672 = vrot.lane.b32.xlu0 %v625, 127
      %v673 = vpop.permute.xlu0 %672
      %674 = vrot.lane.b32.xlu0 %v626, 127
      %v675 = vpop.permute.xlu0 %674
      %676 = vrot.lane.b32.xlu0 %v627, 127
      %v677 = vpop.permute.xlu0 %676
      %678 = vrot.lane.b32.xlu0 %v628, 127
      %v679 = vpop.permute.xlu0 %678
      %680 = vrot.lane.b32.xlu0 %v629, 127
      %v681 = vpop.permute.xlu0 %680
      %682 = vrot.lane.b32.xlu0 %v630, 127
      %v683 = vpop.permute.xlu0 %682
      %684 = vrot.lane.b32.xlu0 %v631, 127
      %v685 = vpop.permute.xlu0 %684
      %686 = vrot.lane.b32.xlu0 %v632, 127
      %v687 = vpop.permute.xlu0 %686
      %vm688 = vcmask 1039360
      %v689 = vsel %vm688, %v653, %v655
      %v690 = vsel %vm688, %v655, %v657
      %v691 = vsel %vm688, %v659, %v661
      %v692 = vsel %vm688, %v661, %v663
      %v693 = vsel %vm688, %v665, %v667
      %v694 = vsel %vm688, %v667, %v669
      %v695 = vsel %vm688, %v671, %v673
      %v696 = vsel %vm688, %v673, %v675
      %v697 = vsel %vm688, %v677, %v679
      %v698 = vsel %vm688, %v679, %v681
      %v699 = vsel %vm688, %v683, %v685
      %v700 = vsel %vm688, %v685, %v687
      %vm711 = vcmask 662528
      %v713 = vsel %vm711, %v633, 0
      %v715 = vsel 0, 4294967295, 65535
      %v716 = vsel %vm310, %v715, 0
      %v718 = vand.u32 %v699, %v716
      %v721 = vand.u32 %v700, %v716
      %723 = vmatpush.bf16.msra.mxu0 0
      %724 = vmatpush.bf16.msra.mxu0 0
      %725 = vmatpush.bf16.msra.mxu0 %v718
      %726 = vmatpush.bf16.msra.mxu0 %v697
      %727 = vmatpush.bf16.msra.mxu0 %v695
      %728 = vmatpush.bf16.msra.mxu0 %v693
      %729 = vmatpush.bf16.msra.mxu0 %v691
      %730 = vmatpush.bf16.msra.mxu0 %v689
      %731 = vmatmul.bf16.gmra.mxu0 %v713
      %v732 = vpop.f32.mrf.mxu0
      %v733 = vadd.f32 0.0, %v732
      %v734 = vpop.f32.mrf.mxu0
      %735 = vdwg.mxu0
      %736 = vmatpush.bf16.msra.mxu0 0
      %737 = vmatpush.bf16.msra.mxu0 0
      %738 = vmatpush.bf16.msra.mxu0 %v721
      %739 = vmatpush.bf16.msra.mxu0 %v698
      %740 = vmatpush.bf16.msra.mxu0 %v696
      %741 = vmatpush.bf16.msra.mxu0 %v694
      %742 = vmatpush.bf16.msra.mxu0 %v692
      %743 = vmatpush.bf16.msra.mxu0 %v690
      %744 = vmatmul.bf16.gmra.mxu0 %v713
      %v745 = vpop.f32.mrf.mxu0
      %v746 = vadd.f32 0.0, %v745
      %v747 = vpop.f32.mrf.mxu0
      %748 = vdwg.mxu0
      %v749 = vmax.f32 %v733, 0.0
      %v750 = vmax.f32 %v746, 0.0
      %753 = vrot.lane.b32.xlu0 %v749, 18
      %v754 = vpop.permute.xlu0 %753
      %755 = vrot.lane.b32.xlu0 %v750, 18
      %v756 = vpop.permute.xlu0 %755
      %vm757 = vcmask 146432
      %v758 = vsel %vm757, %v754, %v756
      %v762 = vsel %vm757, 0.0, %v754
      %v763 = vsel %vm757, %v756, 0.0
      %v764 = vmul.f32 %v762, %v212
      %v765 = vmul.f32 %v758, %v216
      %v766 = vmul.f32 %v763, %v214
      %v767 = vmul.f32 %v762, %v230
      %v768 = vmul.f32 %v758, %v234
      %v769 = vmul.f32 %v763, %v232
      %v770 = vmul.f32 %v762, %v245
      %v771 = vmul.f32 %v758, %v249
      %v772 = vmul.f32 %v763, %v247
      %v773 = vmul.f32 %v762, %v260
      %v774 = vmul.f32 %v758, %v264
      %v775 = vmul.f32 %v763, %v262
      %v776 = vmul.f32 %v762, %v275
      %v777 = vmul.f32 %v758, %v279
      %v778 = vmul.f32 %v763, %v277
      %v779 = vmul.f32 %v762, %v290
      %v780 = vmul.f32 %v758, %v294
      %v781 = vmul.f32 %v763, %v292
      %v784 = vrot.slane %v762, 6
      %v785 = vrot.slane %v758, 6
      %v786 = vrot.slane %v763, 6
      %787 = vrot.lane.b32.xlu0 %v784, 127
      %v788 = vpop.permute.xlu0 %787
      %789 = vrot.lane.b32.xlu0 %v785, 127
      %v790 = vpop.permute.xlu0 %789
      %791 = vrot.lane.b32.xlu0 %v786, 127
      %v792 = vpop.permute.xlu0 %791
      %v793 = vsel %vm332, %v788, %v790
      %v794 = vsel %vm332, %v790, %v792
      %v801 = vrot.slane %v767, 4
      %v802 = vrot.slane %v768, 4
      %v803 = vrot.slane %v769, 4
      %804 = vrot.lane.b32.xlu0 %v801, 126
      %v805 = vpop.permute.xlu0 %804
      %806 = vrot.lane.b32.xlu0 %v802, 126
      %v807 = vpop.permute.xlu0 %806
      %808 = vrot.lane.b32.xlu0 %v803, 126
      %v809 = vpop.permute.xlu0 %808
      %v810 = vsel %vm371, %v805, %v807
      %v811 = vsel %vm371, %v807, %v809
      %v818 = vrot.slane %v770, 2
      %v819 = vrot.slane %v771, 2
      %v820 = vrot.slane %v772, 2
      %821 = vrot.lane.b32.xlu0 %v818, 112
      %v822 = vpop.permute.xlu0 %821
      %823 = vrot.lane.b32.xlu0 %v819, 112
      %v824 = vpop.permute.xlu0 %823
      %825 = vrot.lane.b32.xlu0 %v820, 112
      %v826 = vpop.permute.xlu0 %825
      %v827 = vsel %vm410, %v822, %v824
      %v828 = vsel %vm410, %v824, %v826
      %832 = vrot.lane.b32.xlu0 %v762, 111
      %v833 = vpop.permute.xlu0 %832
      %834 = vrot.lane.b32.xlu0 %v758, 111
      %v835 = vpop.permute.xlu0 %834
      %836 = vrot.lane.b32.xlu0 %v763, 111
      %v837 = vpop.permute.xlu0 %836
      %v838 = vsel %vm443, %v833, %v835
      %v839 = vsel %vm443, %v835, %v837
      %v846 = vrot.slane %v773, 6
      %v847 = vrot.slane %v774, 6
      %v848 = vrot.slane %v775, 6
      %849 = vrot.lane.b32.xlu0 %v846, 110
      %v850 = vpop.permute.xlu0 %849
      %851 = vrot.lane.b32.xlu0 %v847, 110
      %v852 = vpop.permute.xlu0 %851
      %853 = vrot.lane.b32.xlu0 %v848, 110
      %v854 = vpop.permute.xlu0 %853
      %v855 = vsel %vm482, %v850, %v852
      %v856 = vsel %vm482, %v852, %v854
      %v863 = vrot.slane %v776, 4
      %v864 = vrot.slane %v777, 4
      %v865 = vrot.slane %v778, 4
      %866 = vrot.lane.b32.xlu0 %v863, 96
      %v867 = vpop.permute.xlu0 %866
      %868 = vrot.lane.b32.xlu0 %v864, 96
      %v869 = vpop.permute.xlu0 %868
      %870 = vrot.lane.b32.xlu0 %v865, 96
      %v871 = vpop.permute.xlu0 %870
      %v872 = vsel %vm521, %v867, %v869
      %v873 = vsel %vm521, %v869, %v871
      %v877 = vrot.slane %v762, 2
      %v878 = vrot.slane %v758, 2
      %v879 = vrot.slane %v763, 2
      %880 = vrot.lane.b32.xlu0 %v877, 95
      %v881 = vpop.permute.xlu0 %880
      %882 = vrot.lane.b32.xlu0 %v878, 95
      %v883 = vpop.permute.xlu0 %882
      %884 = vrot.lane.b32.xlu0 %v879, 95
      %v885 = vpop.permute.xlu0 %884
      %v886 = vsel %vm554, %v881, %v883
      %v887 = vsel %vm554, %v883, %v885
      %894 = vrot.lane.b32.xlu0 %v779, 94
      %v895 = vpop.permute.xlu0 %894
      %896 = vrot.lane.b32.xlu0 %v780, 94
      %v897 = vpop.permute.xlu0 %896
      %898 = vrot.lane.b32.xlu0 %v781, 94
      %v899 = vpop.permute.xlu0 %898
      %v900 = vsel %vm583, %v895, %v897
      %v901 = vsel %vm583, %v897, %v899
      %v905 = vsel %vm349, %v764, %v793
      %v906 = vsel %vm349, %v765, %v794
      %v907 = vsel %vm349, %v766, %v792
      %v908 = vsel %vm421, %v905, %v810
      %v909 = vsel %vm421, %v906, %v811
      %v910 = vsel %vm421, %v907, %v809
      %v911 = vsel %vm499, %v908, %v827
      %v912 = vsel %vm499, %v909, %v828
      %v913 = vsel %vm499, %v910, %v826
      %v914 = vsel %vm349, %v838, %v855
      %v915 = vsel %vm349, %v839, %v856
      %v916 = vsel %vm349, %v837, %v854
      %v917 = vsel %vm421, %v914, %v872
      %v918 = vsel %vm421, %v915, %v873
      %v919 = vsel %vm421, %v916, %v871
      %v920 = vsel %vm499, %v917, %v886
      %v921 = vsel %vm499, %v918, %v887
      %v922 = vsel %vm499, %v919, %v885
      %v923 = vpack.c.bf16 %v920, %v911
      %v924 = vpack.c.bf16 %v921, %v912
      %v925 = vpack.c.bf16 %v922, %v913
      %v926 = vpack.c.bf16 %v900, %v900
      %v927 = vpack.c.bf16 %v901, %v901
      %v928 = vpack.c.bf16 %v899, %v899
      %v929 = vld [vmem:[%s2] sm:$0xf]
      %936 = vrot.lane.b32.xlu0 %v923, 127
      %v937 = vpop.permute.xlu0 %936
      %938 = vrot.lane.b32.xlu0 %v924, 127
      %v939 = vpop.permute.xlu0 %938
      %940 = vrot.lane.b32.xlu0 %v925, 127
      %v941 = vpop.permute.xlu0 %940
      %942 = vrot.lane.b32.xlu0 %v926, 127
      %v943 = vpop.permute.xlu0 %942
      %944 = vrot.lane.b32.xlu0 %v927, 127
      %v945 = vpop.permute.xlu0 %944
      %946 = vrot.lane.b32.xlu0 %v928, 127
      %v947 = vpop.permute.xlu0 %946
      %v948 = vsel %vm688, %v937, %v939
      %v949 = vsel %vm688, %v939, %v941
      %v950 = vsel %vm688, %v943, %v945
      %v951 = vsel %vm688, %v945, %v947
      %v955 = vsel %vm757, %v929, 0
      %v958 = vsel %vm310, %v950, 0
      %v961 = vsel %vm310, %v951, 0
      %963 = vmatpush.bf16.msra.mxu0 0
      %964 = vmatpush.bf16.msra.mxu0 0
      %965 = vmatpush.bf16.msra.mxu0 0
      %966 = vmatpush.bf16.msra.mxu0 0
      %967 = vmatpush.bf16.msra.mxu0 0
      %968 = vmatpush.bf16.msra.mxu0 0
      %969 = vmatpush.bf16.msra.mxu0 %v958
      %970 = vmatpush.bf16.msra.mxu0 %v948
      %971 = vmatmul.bf16.gmra.mxu0 %v955
      %v972 = vpop.f32.mrf.mxu0
      %v973 = vadd.f32 0.0, %v972
      %v974 = vpop.f32.mrf.mxu0
      %975 = vdwg.mxu0
      %976 = vmatpush.bf16.msra.mxu0 0
      %977 = vmatpush.bf16.msra.mxu0 0
      %978 = vmatpush.bf16.msra.mxu0 0
      %979 = vmatpush.bf16.msra.mxu0 0
      %980 = vmatpush.bf16.msra.mxu0 0
      %981 = vmatpush.bf16.msra.mxu0 0
      %982 = vmatpush.bf16.msra.mxu0 %v961
      %983 = vmatpush.bf16.msra.mxu0 %v949
      %984 = vmatmul.bf16.gmra.mxu0 %v955
      %v985 = vpop.f32.mrf.mxu0
      %v986 = vadd.f32 0.0, %v985
      %v987 = vpop.f32.mrf.mxu0
      %988 = vdwg.mxu0
      %v989 = vxor.u32 %v973, 2147483648
      %v990 = vxor.u32 %v986, 2147483648
      %v991 = vmul.f32 %v989, 1.442695
      %v992 = vpow.pop %v991
      %v993 = vmul.f32 %v990, 1.442695
      %v994 = vpow.pop %v993
      %v995 = vadd.f32 %v992, 1.0
      %v996 = vadd.f32 %v994, 1.0
      %v997 = vrcp.pop %v995
      %v998 = vmul.f32 %v995, %v997
      %v999 = vsub.f32 1.0, %v998
      %v1000 = vmul.f32 %v997, %v999
      %v1001 = vadd.f32 %v997, %v1000
      %vm1002 = vweird.f32 %v995
      %vm1003 = vweird.f32 %v997
      %vm1004 = vmor %vm1002, %vm1003
      %v1005 = vsel %vm1004, %v997, %v1001
      %v1006 = vand.u32 2147483647, %v995
      %vm1007 = vcmp.eq.f32.partialorder %v1006, 8.507059e+37
      %v1008 = vand.u32 %v995, 2147483648
      %v1009 = vor.u32 1.1754944e-38, %v1008
      %v1010 = vsel %vm1007, %v1009, %v1005
      %v1011 = vmul.f32 1.0, %v1010
      %v1012 = vrcp.pop %v996
      %v1013 = vmul.f32 %v996, %v1012
      %v1014 = vsub.f32 1.0, %v1013
      %v1015 = vmul.f32 %v1012, %v1014
      %v1016 = vadd.f32 %v1012, %v1015
      %vm1017 = vweird.f32 %v996
      %vm1018 = vweird.f32 %v1012
      %vm1019 = vmor %vm1017, %vm1018
      %v1020 = vsel %vm1019, %v1012, %v1016
      %v1021 = vand.u32 2147483647, %v996
      %vm1022 = vcmp.eq.f32.partialorder %v1021, 8.507059e+37
      %v1023 = vand.u32 %v996, 2147483648
      %v1024 = vor.u32 1.1754944e-38, %v1023
      %v1025 = vsel %vm1022, %v1024, %v1020
      %v1026 = vmul.f32 1.0, %v1025
      %1029 = vrot.lane.b32.xlu0 %v1011, 18
      %v1030 = vpop.permute.xlu0 %1029
      %1031 = vrot.lane.b32.xlu0 %v1026, 18
      %v1032 = vpop.permute.xlu0 %1031
      %v1033 = vsel %vm757, %v1030, %v1032
      %v1037 = vmul.f32 %v199, %v1030
      %v1038 = vmul.f32 %v200, %v1033
      %v1039 = vmul.f32 %v201, %v1032
      %1043 = vrot.lane.b32.xlu0 %v1037, 110
      %v1044 = vpop.permute.xlu0 %1043
      %1045 = vrot.lane.b32.xlu0 %v1038, 110
      %v1046 = vpop.permute.xlu0 %1045
      %1047 = vrot.lane.b32.xlu0 %v1039, 110
      %v1048 = vpop.permute.xlu0 %1047
      %v1049 = vsel %vm482, %v1044, %v1046
      %v1050 = vsel %vm482, %v1046, %v1048
      %1053 = vst [vmem:[%s197] sm:$0xff] %v1049
      %1054 = vst [vmem:[%s197 + $0x8] sm:$0xff] %v1050
      %p1055 = scmp.lt.s32.totalorder %s15, 1
      %s1056 = scalar_select %p1055, %s15, 1
      %s1057 = smul.addr %s1056, 2
      %s1058 = smul.addr %s1057, 8
      %s1059 = scalar_lea.vmem %s4, %s1058
      // Predicated region
      $region37: #{ring_enhancer.1} parent=35 // pred_check
        %p1060 = pneg %p122
      $region38: #{ring_enhancer.1} parent=35 // pred_check_branch
        %1062 = sbr.rel (%p1060) target = $region40
      $region39: #{ring_enhancer.1} parent=35 // pred_region
        _
      $region40: #{ring_enhancer.1} parent=35 // pred_fallthru
        _
    $region36: #{ring_enhancer.1} parent=5 // pred_fallthru
      _
    %p1063 = scmp.le.s32.totalorder 2, %s10
    // Predicated region
    $region41: #{ring_enhancer.1} parent=5 // pred_check
      %p1064 = pneg %p1063
    $region42: #{ring_enhancer.1} parent=5 // pred_check_branch
      %1066 = sbr.rel (%p1064) target = $region44
    $region43: #{ring_enhancer.1} parent=5 // pred_region
      %s1067 = ssub.s32 %s10, 2
      // Predicated region
      $region45: #{ring_enhancer.1} parent=43 // pred_check
        %p1068 = pneg %p128
      $region46: #{ring_enhancer.1} parent=43 // pred_check_branch
        %1070 = sbr.rel (%p1068) target = $region48
      $region47: #{ring_enhancer.1} parent=43 // pred_region
        %p1071 = scmp.lt.s32.totalorder %s16, 1
        %s1072 = scalar_select %p1071, %s16, 1
        %s1073 = smul.addr %s1072, 2
        %s1074 = smul.addr %s1073, 8
        %s1075 = scalar_lea.vmem %s4, %s1074
      $region48: #{ring_enhancer.1} parent=43 // pred_fallthru
        _
    $region44: #{ring_enhancer.1} parent=5 // pred_fallthru
      _
  $region6: #{ring_enhancer.1} parent=0 // loop_footer
    %s14 = sadd.s32 1, %s10
  $region7: #{ring_enhancer.1} parent=0 // loop_footer_branch
    %9 = sbr.rel target = $region3
  $region8: #{ring_enhancer.1} parent=0 // loop_exit
    _

</llo_original>
